<compile_context>
chip_gen: v5e
topology: v5e:2x2
jax: 0.10.0
libtpu: 0.0.40
codegen_flags: <defaults>
</compile_context>

<pallas_src>
import jax
import jax.numpy as jnp
from jax.experimental import pallas as pl
from jax.experimental.pallas import tpu as pltpu


def _round_up(n: int, m: int) -> int:
    return ((n + m - 1) // m) * m


def _mlp_kernel(x_ref, w1_ref, b1_ref, w2_ref, b2_ref, w3_ref, b3_ref, o_ref):
    """One batch tile: [TB, emb] (native dtype) -> [TB, 1] f32 logits."""
    # Cast to bf16 in VMEM (near-free VPU pack) right before the MXU matmul; x is
    # streamed from HBM in its native dtype so there is no wrapper-side copy.
    xb = x_ref[...].astype(jnp.bfloat16)
    # Layer 1: bf16 MXU matmul, f32 accumulate, f32 bias + ReLU.
    h1 = jnp.dot(xb, w1_ref[...], preferred_element_type=jnp.float32)
    h1 = jnp.maximum(h1 + b1_ref[...], 0.0)          # ReLU (Dropout = identity, eval)
    # Layer 2: small f32 MXU matmul, f32 bias + ReLU.
    h2 = jnp.dot(h1, w2_ref[...], preferred_element_type=jnp.float32)
    h2 = jnp.maximum(h2 + b2_ref[...], 0.0)          # ReLU (Dropout = identity, eval)
    # Layer 3: [TB, H/2] @ [H/2, 1] as a lane reduction (VPU mul + XLU sum) instead
    # of a degenerate 1-lane MXU matmul.
    logit = jnp.sum(h2 * w3_ref[...], axis=-1, keepdims=True) + b3_ref[...]
    o_ref[...] = logit.astype(o_ref.dtype)


def _choose_batch_tile(B: int, E: int, itemsize: int, max_batch_tile: int) -> int:
    """Pick a batch tile: as large as VMEM allows, but with enough grid steps for
    the v7x 2-TC parallel split once the batch is big enough."""
    # Keep the double-buffered x stream within ~20 MiB of VMEM (weights are tiny).
    x_vmem_budget = 20 << 20
    cap = max(8, (x_vmem_budget // (2 * E * itemsize)) // 8 * 8)
    max_tile = max(8, min(max_batch_tile, cap))
    # >=8 steps only when every step still gets >=1024 rows; otherwise fewer,
    # bigger tiles amortise the ~0.35 us per-grid-step overhead.
    steps = max(pl.cdiv(B, max_tile), min(8, B // 1024), 1)
    tb = pl.cdiv(B, steps)
    if tb < B:
        tb = _round_up(tb, 8)   # sublane quantum; when tb == B the block equals the full dim
    return tb


def simple_dense_net_forward(x, params, *, max_batch_tile: int = 4096):
    """x: [B, emb_dim] (f32 or bf16). Returns logits of shape [B] (matches .squeeze(1))."""
    w1, b1, w2, b2, w3_row, b3 = params
    B, E = x.shape
    H = w1.shape[1]
    H2 = w2.shape[1]
    x_itemsize = jnp.dtype(x.dtype).itemsize

    # W1 feeds the bf16 MXU matmul; cast once (grid-invariant, ~tens of KB).
    w1b = w1 if w1.dtype == jnp.bfloat16 else w1.astype(jnp.bfloat16)

    TB = _choose_batch_tile(B, E, x_itemsize, max_batch_tile)
    grid = (pl.cdiv(B, TB),)

    weight_bytes = sum(int(a.size) * jnp.dtype(a.dtype).itemsize
                       for a in (w1b, b1, w2, b2, w3_row, b3))
    # Accurate (tiny) cost so XLA overlaps surrounding ops.
    cost = pl.CostEstimate(
        flops=2 * B * (E * H + H * H2 + H2),
        transcendentals=0,
        bytes_accessed=B * E * x_itemsize + B * 4 + weight_bytes,
    )
    # Scoped-VMEM limit: actual need + headroom; v5e's 16 MiB default would
    # otherwise cap the tile size (physical VMEM is 128 MiB v5e/v6e, 64 MiB v7x).
    vmem_need = 2 * TB * E * x_itemsize + 2 * TB * 4 + weight_bytes
    vmem_limit = int(min(48 << 20, max(16 << 20, vmem_need + (8 << 20))))

    const = lambda i: (0, 0)   # weights/biases: VMEM-resident across grid steps
    out = pl.pallas_call(
        _mlp_kernel,
        out_shape=jax.ShapeDtypeStruct((B, 1), jnp.float32),
        grid=grid,
        in_specs=[
            pl.BlockSpec((TB, E), lambda i: (i, 0)),      # x: streamed per tile (native dtype)
            pl.BlockSpec(w1b.shape, const),               # [E, H]      bf16
            pl.BlockSpec(b1.shape, const),                # [1, H]      f32
            pl.BlockSpec(w2.shape, const),                # [H, H//2]   f32
            pl.BlockSpec(b2.shape, const),                # [1, H//2]   f32
            pl.BlockSpec(w3_row.shape, const),            # [1, H//2]   f32
            pl.BlockSpec(b3.shape, const),                # [1, 1]      f32
        ],
        out_specs=pl.BlockSpec((TB, 1), lambda i: (i, 0)),
        compiler_params=pltpu.CompilerParams(
            dimension_semantics=("parallel",),            # megacore split on v7x
            vmem_limit_bytes=vmem_limit,
        ),
        cost_estimate=cost,
    )(x, w1b, b1, w2, b2, w3_row, b3)
    return out[:, 0]   # squeeze(1) -> [B]


def init_params(key, emb_dim, hidden_dim):
    """PyTorch-Linear-style init (uniform +-1/sqrt(fan_in)).

    W1, W2 are pre-transposed to [in, out] for y = x @ W; W3 is kept as a
    [1, hidden//2] row (PyTorch's native [out, in] layout) because layer 3 is
    implemented as a lane reduction. Biases are [1, out] rows.
    """
    h2 = hidden_dim // 2
    layout = [
        ((emb_dim, hidden_dim), (1, hidden_dim), emb_dim),
        ((hidden_dim, h2), (1, h2), hidden_dim),
        ((1, h2), (1, 1), h2),     # w3 row, b3
    ]
    params = []
    for (w_shape, b_shape, fan_in) in layout:
        key, kw, kb = jax.random.split(key, 3)
        bound = 1.0 / jnp.sqrt(float(fan_in))
        params.append(jax.random.uniform(kw, w_shape, jnp.float32, -bound, bound))
        params.append(jax.random.uniform(kb, b_shape, jnp.float32, -bound, bound))
    return tuple(params)


def _reference_forward(x, params):
    """Pure-JAX reference mirroring the kernel's numerics (bf16 layer-1 matmul,
    f32 accumulation/elementwise). Note: this intentionally matches the kernel,
    so drift vs. a pure-f32 PyTorch forward (~1e-3) is expected and accepted."""
    w1, b1, w2, b2, w3_row, b3 = params
    xb = x.astype(jnp.bfloat16)
    w1b = w1.astype(jnp.bfloat16)
    h1 = jnp.maximum(jnp.dot(xb, w1b, preferred_element_type=jnp.float32) + b1, 0.0)
    h2 = jnp.maximum(jnp.dot(h1, w2, preferred_element_type=jnp.float32) + b2, 0.0)
    return (jnp.sum(h2 * w3_row, axis=-1, keepdims=True) + b3)[:, 0]


if __name__ == "__main__":
    # Small shapes consistent with the module: batch=8, esm_emb_dim=256, hidden=32.
    batch, emb_dim, hidden_dim = 8, 256, 32

    key = jax.random.PRNGKey(0)
    key, kx = jax.random.split(key)
    x = jax.random.normal(kx, (batch, emb_dim), dtype=jnp.float32)
    params = init_params(key, emb_dim, hidden_dim)

    logits = jax.block_until_ready(simple_dense_net_forward(x, params))
    ref = _reference_forward(x, params)

    assert logits.shape == (batch,), logits.shape
    assert jnp.allclose(logits, ref, atol=1e-3, rtol=1e-3), (logits, ref)

    print("KERNEL_OK")
</pallas_src>

<mosaic_0001>
module attributes {stable_mosaic.version = 11 : i64} {
  func.func @_mlp_kernel(%arg0: i32, %arg1: memref<8x256xf32, #tpu.memory_space<vmem>>, %arg2: memref<256x32xbf16, #tpu.memory_space<vmem>>, %arg3: memref<1x32xf32, #tpu.memory_space<vmem>>, %arg4: memref<32x16xf32, #tpu.memory_space<vmem>>, %arg5: memref<1x16xf32, #tpu.memory_space<vmem>>, %arg6: memref<1x16xf32, #tpu.memory_space<vmem>>, %arg7: memref<1x1xf32, #tpu.memory_space<vmem>>, %arg8: memref<8x1xf32, #tpu.memory_space<vmem>>) attributes {dimension_semantics = [#tpu.dimension_semantics<parallel>], iteration_bounds = array<i64: 1>, scalar_prefetch = 0 : i64, scratch_operands = 0 : i64, tpu.core_type = #tpu.core_type<tc>, window_params = [{transform_indices = @transform_0, window_bounds = array<i64: 8, 256>}, {pipeline_mode = #tpu.pipeline_mode<synchronous>, transform_indices = @transform_1, window_bounds = array<i64: 256, 32>}, {pipeline_mode = #tpu.pipeline_mode<synchronous>, transform_indices = @transform_2, window_bounds = array<i64: 1, 32>}, {pipeline_mode = #tpu.pipeline_mode<synchronous>, transform_indices = @transform_3, window_bounds = array<i64: 32, 16>}, {pipeline_mode = #tpu.pipeline_mode<synchronous>, transform_indices = @transform_4, window_bounds = array<i64: 1, 16>}, {pipeline_mode = #tpu.pipeline_mode<synchronous>, transform_indices = @transform_5, window_bounds = array<i64: 1, 16>}, {pipeline_mode = #tpu.pipeline_mode<synchronous>, transform_indices = @transform_6, window_bounds = array<i64: 1, 1>}, {transform_indices = @transform_7, window_bounds = array<i64: 8, 1>}]} {
    %c0 = arith.constant 0 : index
    %c0_0 = arith.constant 0 : index
    %0 = vector.load %arg1[%c0, %c0_0] : memref<8x256xf32, #tpu.memory_space<vmem>>, vector<8x256xf32>
    %1 = arith.truncf %0 : vector<8x256xf32> to vector<8x256xbf16>
    %c0_1 = arith.constant 0 : index
    %c0_2 = arith.constant 0 : index
    %2 = vector.load %arg2[%c0_1, %c0_2] : memref<256x32xbf16, #tpu.memory_space<vmem>>, vector<256x32xbf16>
    %cst = arith.constant dense<0.000000e+00> : vector<8x32xf32>
    %3 = tpu.matmul %1, %2, %cst {dimension_numbers = #tpu.dot_dimension_numbers<[1], [0], [0], [1], [0, 0, 1, 1], [], []>} : vector<8x256xbf16>, vector<256x32xbf16>, vector<8x32xf32> -> vector<8x32xf32>
    %c0_3 = arith.constant 0 : index
    %c0_4 = arith.constant 0 : index
    %4 = vector.load %arg3[%c0_3, %c0_4] : memref<1x32xf32, #tpu.memory_space<vmem>>, vector<1x32xf32>
    %5 = vector.broadcast %4 : vector<1x32xf32> to vector<8x32xf32>
    %6 = arith.addf %3, %5 : vector<8x32xf32>
    %cst_5 = arith.constant 0.000000e+00 : f32
    %7 = vector.broadcast %cst_5 : f32 to vector<8x32xf32>
    %8 = arith.maximumf %6, %7 : vector<8x32xf32>
    %c0_6 = arith.constant 0 : index
    %c0_7 = arith.constant 0 : index
    %9 = vector.load %arg4[%c0_6, %c0_7] : memref<32x16xf32, #tpu.memory_space<vmem>>, vector<32x16xf32>
    %cst_8 = arith.constant dense<0.000000e+00> : vector<8x16xf32>
    %10 = tpu.matmul %8, %9, %cst_8 {dimension_numbers = #tpu.dot_dimension_numbers<[1], [0], [0], [1], [0, 0, 1, 1], [], []>} : vector<8x32xf32>, vector<32x16xf32>, vector<8x16xf32> -> vector<8x16xf32>
    %c0_9 = arith.constant 0 : index
    %c0_10 = arith.constant 0 : index
    %11 = vector.load %arg5[%c0_9, %c0_10] : memref<1x16xf32, #tpu.memory_space<vmem>>, vector<1x16xf32>
    %12 = vector.broadcast %11 : vector<1x16xf32> to vector<8x16xf32>
    %13 = arith.addf %10, %12 : vector<8x16xf32>
    %cst_11 = arith.constant 0.000000e+00 : f32
    %14 = vector.broadcast %cst_11 : f32 to vector<8x16xf32>
    %15 = arith.maximumf %13, %14 : vector<8x16xf32>
    %c0_12 = arith.constant 0 : index
    %c0_13 = arith.constant 0 : index
    %16 = vector.load %arg6[%c0_12, %c0_13] : memref<1x16xf32, #tpu.memory_space<vmem>>, vector<1x16xf32>
    %17 = vector.broadcast %16 : vector<1x16xf32> to vector<8x16xf32>
    %18 = arith.mulf %15, %17 : vector<8x16xf32>
    %cst_14 = arith.constant dense<0.000000e+00> : vector<8xf32>
    %19 = vector.multi_reduction <add>, %18, %cst_14 [1] : vector<8x16xf32> to vector<8xf32>
    %20 = vector.shape_cast %19 : vector<8xf32> to vector<8x1xf32>
    %c0_15 = arith.constant 0 : index
    %c0_16 = arith.constant 0 : index
    %21 = vector.load %arg7[%c0_15, %c0_16] : memref<1x1xf32, #tpu.memory_space<vmem>>, vector<1x1xf32>
    %22 = vector.broadcast %21 : vector<1x1xf32> to vector<8x1xf32>
    %23 = arith.addf %20, %22 : vector<8x1xf32>
    %c0_17 = arith.constant 0 : index
    %c0_18 = arith.constant 0 : index
    %24 = vector.load %arg8[%c0_17, %c0_18] : memref<8x1xf32, #tpu.memory_space<vmem>>, vector<8x1xf32>
    tpu.vector_store %arg8[%c0_17, %c0_18], %23 {strides = array<i32>} : memref<8x1xf32, #tpu.memory_space<vmem>>, vector<8x1xf32>,
    return
  }
  func.func @transform_0(%arg0: i32) -> (i32, i32) {
    %c0_i32 = arith.constant 0 : i32
    %c0_i32_0 = arith.constant 0 : i32
    return %arg0, %c0_i32 : i32, i32
  }
  func.func @transform_1(%arg0: i32) -> (i32, i32) {
    %c0_i32 = arith.constant 0 : i32
    %c0_i32_0 = arith.constant 0 : i32
    %c0_i32_1 = arith.constant 0 : i32
    return %c0_i32, %c0_i32_0 : i32, i32
  }
  func.func @transform_2(%arg0: i32) -> (i32, i32) {
    %c0_i32 = arith.constant 0 : i32
    %c0_i32_0 = arith.constant 0 : i32
    %c0_i32_1 = arith.constant 0 : i32
    return %c0_i32, %c0_i32_0 : i32, i32
  }
  func.func @transform_3(%arg0: i32) -> (i32, i32) {
    %c0_i32 = arith.constant 0 : i32
    %c0_i32_0 = arith.constant 0 : i32
    %c0_i32_1 = arith.constant 0 : i32
    return %c0_i32, %c0_i32_0 : i32, i32
  }
  func.func @transform_4(%arg0: i32) -> (i32, i32) {
    %c0_i32 = arith.constant 0 : i32
    %c0_i32_0 = arith.constant 0 : i32
    %c0_i32_1 = arith.constant 0 : i32
    return %c0_i32, %c0_i32_0 : i32, i32
  }
  func.func @transform_5(%arg0: i32) -> (i32, i32) {
    %c0_i32 = arith.constant 0 : i32
    %c0_i32_0 = arith.constant 0 : i32
    %c0_i32_1 = arith.constant 0 : i32
    return %c0_i32, %c0_i32_0 : i32, i32
  }
  func.func @transform_6(%arg0: i32) -> (i32, i32) {
    %c0_i32 = arith.constant 0 : i32
    %c0_i32_0 = arith.constant 0 : i32
    %c0_i32_1 = arith.constant 0 : i32
    return %c0_i32, %c0_i32_0 : i32, i32
  }
  func.func @transform_7(%arg0: i32) -> (i32, i32) {
    %c0_i32 = arith.constant 0 : i32
    %c0_i32_0 = arith.constant 0 : i32
    return %arg0, %c0_i32 : i32, i32
  }
}

</mosaic_0001>

<llo_original>
// kernel: tpu_custom_call.1
$region0: #{tpu_custom_call.1}
  #allocation0 [shape = 'u32[]', space=smem, size = 0x4, offset = 0x4, fixed_abs, tag = 'smem constant byte address 0x4 - core index']
  #allocation1 [shape = 'u32[72,128]{1,0:T(1,128)}', space=vmem, size = 0x9000, scoped, tag = 'internal scratch']
  #allocation2 [shape = 'f32[1,1]{1,0:T(1,128)S(1)}', space=vmem, size = 0x200, scoped, tag = 'scoped memory for tpu_custom_call.1']
  %s0 = inlined_call_operand.vmem [shape: f32[8,256], index: 0, kind: input, shape index: {}]
  %s1 = inlined_call_operand.vmem [shape: bf16[256,32], index: 1, kind: input, shape index: {}]
  %s2 = inlined_call_operand.vmem [shape: f32[1,32], index: 2, kind: input, shape index: {}]
  %s3 = inlined_call_operand.vmem [shape: f32[32,16], index: 3, kind: input, shape index: {}]
  %s4 = inlined_call_operand.vmem [shape: f32[1,16], index: 4, kind: input, shape index: {}]
  %s5 = inlined_call_operand.vmem [shape: f32[1,16], index: 5, kind: input, shape index: {}]
  %s6 = inlined_call_operand.<no memory space> [shape: f32[1,1], index: 6, kind: input, shape index: {}]
  %s7 = inlined_call_operand.vmem [shape: f32[8,1], index: 7, kind: output, shape index: {}]
  %s8 = sld [smem:[#allocation0]]
  $region38: #{tpu_custom_call.1} parent=0
    _
  %s10 = ssub.s32 1, %s8
  %s11 = scalar_select 0, %s10, %s8
  %v12 = vstv %s6
  %13 = vst [vmem:[#allocation2] sm:$0x1] %v12
  // Predicated region
  $region2: #{tpu_custom_call.1} parent=0 // pred_check
    _
  $region3: #{tpu_custom_call.1} parent=0 // pred_check_branch
    %15 = sbr.rel (0) target = $region5
  $region4: #{tpu_custom_call.1} parent=0 // pred_region
    _
  $region5: #{tpu_custom_call.1} parent=0 // pred_fallthru
    _
  // Predicated region
  $region6: #{tpu_custom_call.1} parent=0 // pred_check
    _
  $region7: #{tpu_custom_call.1} parent=0 // pred_check_branch
    %17 = sbr.rel (0) target = $region9
  $region8: #{tpu_custom_call.1} parent=0 // pred_region
    _
  $region9: #{tpu_custom_call.1} parent=0 // pred_fallthru
    _
  // Predicated region
  $region10: #{tpu_custom_call.1} parent=0 // pred_check
    _
  $region11: #{tpu_custom_call.1} parent=0 // pred_check_branch
    %19 = sbr.rel (0) target = $region13
  $region12: #{tpu_custom_call.1} parent=0 // pred_region
    _
  $region13: #{tpu_custom_call.1} parent=0 // pred_fallthru
    _
  // Predicated region
  $region14: #{tpu_custom_call.1} parent=0 // pred_check
    _
  $region15: #{tpu_custom_call.1} parent=0 // pred_check_branch
    %21 = sbr.rel (0) target = $region17
  $region16: #{tpu_custom_call.1} parent=0 // pred_region
    _
  $region17: #{tpu_custom_call.1} parent=0 // pred_fallthru
    _
  // Predicated region
  $region18: #{tpu_custom_call.1} parent=0 // pred_check
    _
  $region19: #{tpu_custom_call.1} parent=0 // pred_check_branch
    %23 = sbr.rel (0) target = $region21
  $region20: #{tpu_custom_call.1} parent=0 // pred_region
    _
  $region21: #{tpu_custom_call.1} parent=0 // pred_fallthru
    _
  // Predicated region
  $region22: #{tpu_custom_call.1} parent=0 // pred_check
    _
  $region23: #{tpu_custom_call.1} parent=0 // pred_check_branch
    %25 = sbr.rel (0) target = $region25
  $region24: #{tpu_custom_call.1} parent=0 // pred_region
    _
  $region25: #{tpu_custom_call.1} parent=0 // pred_fallthru
    _
  // Predicated region
  $region26: #{tpu_custom_call.1} parent=0 // pred_check
    _
  $region27: #{tpu_custom_call.1} parent=0 // pred_check_branch
    %27 = sbr.rel (0) target = $region29
  $region28: #{tpu_custom_call.1} parent=0 // pred_region
    _
  $region29: #{tpu_custom_call.1} parent=0 // pred_fallthru
    _
  %v28 = vld [vmem:[%s0] sm:$0xff]
  %v29 = vld [vmem:[%s0 + $0x8] sm:$0xff]
  %v30 = vpack.c.bf16 %v28, %v28
  %v31 = vpack.c.bf16 %v29, %v29
  %v32 = vld [vmem:[%s1] sm:$0xf]
  %v33 = vld [vmem:[%s1 + $0x4] sm:$0xf]
  %v34 = vld [vmem:[%s1 + $0x8] sm:$0xf]
  %v35 = vld [vmem:[%s1 + $0xc] sm:$0xf]
  %v36 = vld [vmem:[%s1 + $0x10] sm:$0xf]
  %v37 = vld [vmem:[%s1 + $0x14] sm:$0xf]
  %v38 = vld [vmem:[%s1 + $0x18] sm:$0xf]
  %v39 = vld [vmem:[%s1 + $0x1c] sm:$0xf]
  %v40 = vld [vmem:[%s1 + $0x20] sm:$0xf]
  %v41 = vld [vmem:[%s1 + $0x24] sm:$0xf]
  %v42 = vld [vmem:[%s1 + $0x28] sm:$0xf]
  %v43 = vld [vmem:[%s1 + $0x2c] sm:$0xf]
  %v44 = vld [vmem:[%s1 + $0x30] sm:$0xf]
  %v45 = vld [vmem:[%s1 + $0x34] sm:$0xf]
  %v46 = vld [vmem:[%s1 + $0x38] sm:$0xf]
  %v47 = vld [vmem:[%s1 + $0x3c] sm:$0xf]
  %v48 = vld [vmem:[%s1 + $0x40] sm:$0xf]
  %v49 = vld [vmem:[%s1 + $0x44] sm:$0xf]
  %v50 = vld [vmem:[%s1 + $0x48] sm:$0xf]
  %v51 = vld [vmem:[%s1 + $0x4c] sm:$0xf]
  %v52 = vld [vmem:[%s1 + $0x50] sm:$0xf]
  %v53 = vld [vmem:[%s1 + $0x54] sm:$0xf]
  %v54 = vld [vmem:[%s1 + $0x58] sm:$0xf]
  %v55 = vld [vmem:[%s1 + $0x5c] sm:$0xf]
  %v56 = vld [vmem:[%s1 + $0x60] sm:$0xf]
  %v57 = vld [vmem:[%s1 + $0x64] sm:$0xf]
  %v58 = vld [vmem:[%s1 + $0x68] sm:$0xf]
  %v59 = vld [vmem:[%s1 + $0x6c] sm:$0xf]
  %v60 = vld [vmem:[%s1 + $0x70] sm:$0xf]
  %v61 = vld [vmem:[%s1 + $0x74] sm:$0xf]
  %v62 = vld [vmem:[%s1 + $0x78] sm:$0xf]
  %v63 = vld [vmem:[%s1 + $0x7c] sm:$0xf]
  %v64 = vld [vmem:[%s2] sm:$0x1]
  %v66 = vperm.slane %v64, 0
  %v100 = vunpack.c.l.b16 %v32
  %v101 = vunpack.c.l.b16 %v33
  %v102 = vunpack.c.l.b16 %v34
  %v103 = vunpack.c.l.b16 %v35
  %v104 = vunpack.c.l.b16 %v36
  %v105 = vunpack.c.l.b16 %v37
  %v106 = vunpack.c.l.b16 %v38
  %v107 = vunpack.c.l.b16 %v39
  %v108 = vunpack.c.l.b16 %v40
  %v109 = vunpack.c.l.b16 %v41
  %v110 = vunpack.c.l.b16 %v42
  %v111 = vunpack.c.l.b16 %v43
  %v112 = vunpack.c.l.b16 %v44
  %v113 = vunpack.c.l.b16 %v45
  %v114 = vunpack.c.l.b16 %v46
  %v115 = vunpack.c.l.b16 %v47
  %v116 = vunpack.c.l.b16 %v48
  %v117 = vunpack.c.l.b16 %v49
  %v118 = vunpack.c.l.b16 %v50
  %v119 = vunpack.c.l.b16 %v51
  %v120 = vunpack.c.l.b16 %v52
  %v121 = vunpack.c.l.b16 %v53
  %v122 = vunpack.c.l.b16 %v54
  %v123 = vunpack.c.l.b16 %v55
  %v124 = vunpack.c.l.b16 %v56
  %v125 = vunpack.c.l.b16 %v57
  %v126 = vunpack.c.l.b16 %v58
  %v127 = vunpack.c.l.b16 %v59
  %v128 = vunpack.c.l.b16 %v60
  %v129 = vunpack.c.l.b16 %v61
  %v130 = vunpack.c.l.b16 %v62
  %v131 = vunpack.c.l.b16 %v63
  %v132 = vpack.c.b16 %v101, %v100
  %v133 = vpack.c.b16 %v103, %v102
  %v134 = vpack.c.b16 %v105, %v104
  %v135 = vpack.c.b16 %v107, %v106
  %v136 = vpack.c.b16 %v109, %v108
  %v137 = vpack.c.b16 %v111, %v110
  %v138 = vpack.c.b16 %v113, %v112
  %v139 = vpack.c.b16 %v115, %v114
  %v140 = vpack.c.b16 %v117, %v116
  %v141 = vpack.c.b16 %v119, %v118
  %v142 = vpack.c.b16 %v121, %v120
  %v143 = vpack.c.b16 %v123, %v122
  %v144 = vpack.c.b16 %v125, %v124
  %v145 = vpack.c.b16 %v127, %v126
  %v146 = vpack.c.b16 %v129, %v128
  %v147 = vpack.c.b16 %v131, %v130
  %164 = vmatpush.bf16.msra.mxu0 %v139
  %165 = vmatpush.bf16.msra.mxu0 %v138
  %166 = vmatpush.bf16.msra.mxu0 %v137
  %167 = vmatpush.bf16.msra.mxu0 %v136
  %168 = vmatpush.bf16.msra.mxu0 %v135
  %169 = vmatpush.bf16.msra.mxu0 %v134
  %170 = vmatpush.bf16.msra.mxu0 %v133
  %171 = vmatpush.bf16.msra.mxu0 %v132
  %172 = vmatmul.bf16.gmra.mxu0 %v30
  %v173 = vpop.f32.mrf.mxu0
  %v174 = vadd.f32 %v66, %v173
  %v175 = vpop.f32.mrf.mxu0
  %176 = vdwg.mxu0
  %177 = vmatpush.bf16.msra.mxu0 %v147
  %178 = vmatpush.bf16.msra.mxu0 %v146
  %179 = vmatpush.bf16.msra.mxu0 %v145
  %180 = vmatpush.bf16.msra.mxu0 %v144
  %181 = vmatpush.bf16.msra.mxu0 %v143
  %182 = vmatpush.bf16.msra.mxu0 %v142
  %183 = vmatpush.bf16.msra.mxu0 %v141
  %184 = vmatpush.bf16.msra.mxu0 %v140
  %185 = vmatmul.bf16.gmra.mxu0 %v31
  %v186 = vpop.f32.mrf.mxu0
  %v187 = vadd.f32 %v174, %v186
  %v188 = vpop.f32.mrf.mxu0
  %189 = vdwg.mxu0
  %v190 = vmax.f32 %v187, 0.0
  %v191 = vld [vmem:[%s3] sm:$0xff]
  %v192 = vld [vmem:[%s3 + $0x8] sm:$0xff]
  %v193 = vld [vmem:[%s3 + $0x10] sm:$0xff]
  %v194 = vld [vmem:[%s3 + $0x18] sm:$0xff]
  %v195 = vld [vmem:[%s4] sm:$0x1]
  %v197 = vperm.slane %v195, 0
  %vm199 = vcmask 261120
  %v201 = vsel %vm199, %v190, 0
  %203 = vmatpush.msra.mxu0 0.0
  %204 = vmatpush.msra.mxu0 0.0
  %205 = vmatpush.msra.mxu0 0.0
  %206 = vmatpush.msra.mxu0 0.0
  %207 = vmatpush.msra.mxu0 0.0
  %208 = vmatpush.msra.mxu0 0.0
  %209 = vmatpush.msra.mxu0 0.0
  %210 = vmatpush.msra.mxu0 0.0
  %211 = vmatpush.msra.mxu0 0.0
  %212 = vmatpush.msra.mxu0 0.0
  %213 = vmatpush.msra.mxu0 0.0
  %214 = vmatpush.msra.mxu0 0.0
  %215 = vmatpush.msra.mxu0 %v194
  %216 = vmatpush.msra.mxu0 %v193
  %217 = vmatpush.msra.mxu0 %v192
  %218 = vmatpush.msra.mxu0 %v191
  %219 = vmatmul.f32.gmra.mxu0 %v201
  %v220 = vpop.f32.mrf.mxu0
  %v221 = vadd.f32 %v197, %v220
  %222 = vdwg.mxu0
  %v223 = vmax.f32 %v221, 0.0
  %v224 = vld [vmem:[%s5] sm:$0x1]
  %v226 = vperm.slane %v224, 0
  %v228 = vmul.f32 %v223, %v226
  %vm229 = vcmask 130048
  %v230 = vsel %vm229, %v228, 0.0
  %231 = vadd.xlane.f32.xlu0 %v230
  %v232 = vpop.xlane.xlu0 %231
  %v233 = vld [vmem:[#allocation2] sm:$0x1]
  %v235 = vperm.slane %v233, 0
  %v237 = vadd.f32 %v232, %v235
  %vm238 = vcmask 7168
  %239 = vst.msk [vmem:[%s7] sm:$0xff] %vm238, %v237
  // Predicated region
  $region30: #{tpu_custom_call.1} parent=0 // pred_check
    _
  $region31: #{tpu_custom_call.1} parent=0 // pred_check_branch
    %241 = sbr.rel (0) target = $region33
  $region32: #{tpu_custom_call.1} parent=0 // pred_region
    _
  $region33: #{tpu_custom_call.1} parent=0 // pred_fallthru
    _
  // Predicated region
  $region34: #{tpu_custom_call.1} parent=0 // pred_check
    _
  $region35: #{tpu_custom_call.1} parent=0 // pred_check_branch
    %243 = sbr.rel (0) target = $region37
  $region36: #{tpu_custom_call.1} parent=0 // pred_region
    _
  $region37: #{tpu_custom_call.1} parent=0 // pred_fallthru
    _

</llo_original>
